<compile_context>
chip_gen: v7x
topology: tpu7x:2x2x1
jax: 0.10.0
libtpu: 0.0.40
codegen_flags: <defaults>
</compile_context>

<pallas_src>
import functools

import jax
import jax.numpy as jnp
from jax.experimental import pallas as pl
from jax.experimental.pallas import tpu as pltpu


def _cdiv(a, b):
    return -(-a // b)


def _vmem_limit_bytes():
    """Derive a scoped-VMEM budget per chip (v7x has only 64 MiB/TC)."""
    try:
        cap = int(pltpu.get_tpu_info().vmem_capacity_bytes)
    except Exception:
        cap = 64 * 1024 * 1024
    return max(16 * 1024 * 1024, min(int(cap * 0.4), 48 * 1024 * 1024))


_VMEM_LIMIT = _vmem_limit_bytes()


# ---------------------------------------------------------------------------
# Direct convolution kernel (bias + activation fused, f32 accumulate)
# ---------------------------------------------------------------------------

def _conv2d_kernel(x_ref, w_ref, b_ref, o_ref, *, kh, kw, stride, act):
    # x_ref: (1, s, s, Hs, Ws, Cin) bf16 phase-split padded input (one image)
    # w_ref: (kh*kw*Cin, Cout) bf16     b_ref: (1, Cout) f32
    # o_ref: (1, OH, OW, Cout)
    oh, ow, cout = o_ref.shape[1], o_ref.shape[2], o_ref.shape[3]
    cin = w_ref.shape[0] // (kh * kw)
    bias = b_ref[...]                                           # (1, cout) f32
    # Hoist per-tap weight tiles (cin, cout) out of the row loop.
    w_taps = [w_ref[t * cin:(t + 1) * cin, :] for t in range(kh * kw)]
    for r in range(oh):                                         # static unroll
        acc = jnp.zeros((ow, cout), jnp.float32) + bias
        for i in range(kh):
            ri, pi = i // stride, i % stride
            for j in range(kw):
                rj, pj = j // stride, j % stride
                row = x_ref[0, pi, pj, ri + r, rj:rj + ow, :]   # (ow, cin) bf16
                acc = acc + jnp.dot(row, w_taps[i * kw + j],
                                    preferred_element_type=jnp.float32)
        if act == "relu":
            acc = jnp.maximum(acc, 0.0)
        elif act == "lrelu":
            acc = jnp.where(acc >= 0.0, acc, 0.2 * acc)
        o_ref[0, r, :, :] = acc.astype(o_ref.dtype)


def _phase_split(xp, stride):
    """(B, Hp, Wp, C) -> (B, s, s, Hp/s, Wp/s, C): strided taps become
    contiguous windows.  Pure reshape/transpose at the XLA level."""
    B, Hp, Wp, C = xp.shape
    x = xp.reshape(B, Hp // stride, stride, Wp // stride, stride, C)
    return jnp.transpose(x, (0, 2, 4, 1, 3, 5))


def conv2d(x_nhwc, w, bias, stride=1, pad=1, act="none", out_dtype=jnp.bfloat16):
    """x_nhwc: (B, H, W, Cin); w: (Cout, Cin, kh, kw) (PyTorch layout)."""
    cout, cin, kh, kw = w.shape
    B, H, W, C = x_nhwc.shape
    assert C == cin, (C, cin)
    Hp, Wp = H + 2 * pad, W + 2 * pad
    eh, ew = (-Hp) % stride, (-Wp) % stride
    xp = jnp.pad(x_nhwc, ((0, 0), (pad, pad + eh), (pad, pad + ew), (0, 0)))
    Hp, Wp = Hp + eh, Wp + ew
    oh = (H + 2 * pad - kh) // stride + 1
    ow = (W + 2 * pad - kw) // stride + 1

    xs = _phase_split(xp.astype(jnp.bfloat16), stride)   # (B, s, s, Hs, Ws, C)
    hs, ws = Hp // stride, Wp // stride
    w_mat = jnp.transpose(w, (2, 3, 1, 0)).reshape(kh * kw * cin, cout)
    w_mat = w_mat.astype(jnp.bfloat16)
    b_row = bias.reshape(1, cout).astype(jnp.float32)

    return pl.pallas_call(
        functools.partial(_conv2d_kernel, kh=kh, kw=kw, stride=stride, act=act),
        out_shape=jax.ShapeDtypeStruct((B, oh, ow, cout), out_dtype),
        grid=(B,),
        in_specs=[
            pl.BlockSpec((1, stride, stride, hs, ws, cin),
                         lambda b: (b, 0, 0, 0, 0, 0)),
            pl.BlockSpec((kh * kw * cin, cout), lambda b: (0, 0)),
            pl.BlockSpec((1, cout), lambda b: (0, 0)),
        ],
        out_specs=pl.BlockSpec((1, oh, ow, cout), lambda b: (b, 0, 0, 0)),
        compiler_params=pltpu.CompilerParams(
            dimension_semantics=("parallel",),
            vmem_limit_bytes=_VMEM_LIMIT),
    )(xs, w_mat, b_row)


# ---------------------------------------------------------------------------
# Tiled, lane-dense scalar reductions
# ---------------------------------------------------------------------------

def _recon_sum_kernel(x_ref, y_ref, l1_ref, l2_ref):
    @pl.when(pl.program_id(0) == 0)
    def _init():
        l1_ref[...] = jnp.zeros_like(l1_ref)
        l2_ref[...] = jnp.zeros_like(l2_ref)
    d = y_ref[...] - x_ref[...]
    l1_ref[...] += jnp.sum(jnp.abs(d)).reshape(1, 1)
    l2_ref[...] += jnp.sum(d * d).reshape(1, 1)


def recon_losses(inputs, reconstructions, max_tile_rows=512):
    """Fused mean|d| and mean d^2 over a lane-dense (rows, 128) layout."""
    x = inputs.astype(jnp.float32).reshape(-1)
    y = reconstructions.astype(jnp.float32).reshape(-1)
    n = x.shape[0]
    lanes = 128
    rows = _cdiv(n, lanes)
    tile = min(max_tile_rows, _cdiv(rows, 8) * 8)
    rows_p = _cdiv(rows, tile) * tile
    padn = rows_p * lanes - n
    x = jnp.pad(x, (0, padn)).reshape(rows_p, lanes)
    y = jnp.pad(y, (0, padn)).reshape(rows_p, lanes)
    s1, s2 = pl.pallas_call(
        _recon_sum_kernel,
        out_shape=(jax.ShapeDtypeStruct((1, 1), jnp.float32),
                   jax.ShapeDtypeStruct((1, 1), jnp.float32)),
        grid=(rows_p // tile,),
        in_specs=[pl.BlockSpec((tile, lanes), lambda i: (i, 0)),
                  pl.BlockSpec((tile, lanes), lambda i: (i, 0))],
        out_specs=(pl.BlockSpec((1, 1), lambda i: (0, 0)),
                   pl.BlockSpec((1, 1), lambda i: (0, 0))),
        compiler_params=pltpu.CompilerParams(
            dimension_semantics=("arbitrary",)),
    )(x, y)
    denom = jnp.float32(n)
    return s1[0, 0] / denom, s2[0, 0] / denom


def _lpips_layer_kernel(fa_ref, fb_ref, w_ref, o_ref):
    @pl.when(pl.program_id(0) == 0)
    def _init():
        o_ref[...] = jnp.zeros_like(o_ref)
    fa = fa_ref[...].astype(jnp.float32)
    fb = fb_ref[...].astype(jnp.float32)
    na = fa * jax.lax.rsqrt(jnp.sum(fa * fa, axis=-1, keepdims=True) + 1e-10)
    nb = fb * jax.lax.rsqrt(jnp.sum(fb * fb, axis=-1, keepdims=True) + 1e-10)
    d = (na - nb) * (na - nb)
    o_ref[...] += jnp.sum(d * w_ref[...]).reshape(1, 1)


def lpips_layer_distance(feats, lin_w, max_tile_rows=512):
    """feats: (2B, OH, OW, C) with first B = features(x), last B = features(y)."""
    two_b, oh, ow, C = feats.shape
    B = two_b // 2
    rows = B * oh * ow
    fa = feats[:B].reshape(rows, C)
    fb = feats[B:].reshape(rows, C)
    tile = min(max_tile_rows, _cdiv(rows, 8) * 8)
    rows_p = _cdiv(rows, tile) * tile
    if rows_p != rows:
        fa = jnp.pad(fa, ((0, rows_p - rows), (0, 0)))
        fb = jnp.pad(fb, ((0, rows_p - rows), (0, 0)))
    out = pl.pallas_call(
        _lpips_layer_kernel,
        out_shape=jax.ShapeDtypeStruct((1, 1), jnp.float32),
        grid=(rows_p // tile,),
        in_specs=[pl.BlockSpec((tile, C), lambda i: (i, 0)),
                  pl.BlockSpec((tile, C), lambda i: (i, 0)),
                  pl.BlockSpec((1, C), lambda i: (0, 0))],
        out_specs=pl.BlockSpec((1, 1), lambda i: (0, 0)),
        compiler_params=pltpu.CompilerParams(
            dimension_semantics=("arbitrary",)),
    )(fa, fb, lin_w.reshape(1, C).astype(jnp.float32))
    return out[0, 0] / jnp.float32(rows)


# ---------------------------------------------------------------------------
# Hinge losses with the 512->1 FC head fused in (VPU dot + mean, no matmul)
# ---------------------------------------------------------------------------

def _gen_hinge_kernel(f_ref, w_ref, b_ref, o_ref):
    f = f_ref[...].astype(jnp.float32)                       # (B, D)
    logits = jnp.sum(f * w_ref[...], axis=-1, keepdims=True) + b_ref[...]
    o_ref[...] = (-jnp.mean(logits)).reshape(1, 1)


def gen_hinge_loss(feat_fake, fc_w, fc_b):
    _, D = feat_fake.shape
    out = pl.pallas_call(
        _gen_hinge_kernel,
        out_shape=jax.ShapeDtypeStruct((1, 1), jnp.float32),
    )(feat_fake, fc_w.reshape(1, D).astype(jnp.float32),
      fc_b.reshape(1, 1).astype(jnp.float32))
    return out[0, 0]


def _disc_hinge_kernel(f_ref, w_ref, b_ref, d_ref, mr_ref, mf_ref):
    f = f_ref[...].astype(jnp.float32)                       # (2B, D)
    logits = jnp.sum(f * w_ref[...], axis=-1, keepdims=True) + b_ref[...]
    nb = f.shape[0] // 2
    lr = logits[:nb]
    lf = logits[nb:]
    d_ref[...] = (0.5 * (jnp.mean(jnp.maximum(1.0 - lr, 0.0))
                         + jnp.mean(jnp.maximum(1.0 + lf, 0.0)))).reshape(1, 1)
    mr_ref[...] = jnp.mean(lr).reshape(1, 1)
    mf_ref[...] = jnp.mean(lf).reshape(1, 1)


def disc_hinge_loss(feat_real_fake, fc_w, fc_b):
    _, D = feat_real_fake.shape
    d, mr, mf = pl.pallas_call(
        _disc_hinge_kernel,
        out_shape=(jax.ShapeDtypeStruct((1, 1), jnp.float32),) * 3,
    )(feat_real_fake, fc_w.reshape(1, D).astype(jnp.float32),
      fc_b.reshape(1, 1).astype(jnp.float32))
    return d[0, 0], mr[0, 0], mf[0, 0]


# ---------------------------------------------------------------------------
# Parameter init
# ---------------------------------------------------------------------------

def _conv_init(key, cout, cin, kh, kw):
    fan_in = cin * kh * kw
    w = jax.random.normal(key, (cout, cin, kh, kw), jnp.float32) / jnp.sqrt(float(fan_in))
    b = jnp.zeros((cout,), jnp.float32)
    return w, b


# ---------------------------------------------------------------------------
# The module
# ---------------------------------------------------------------------------

class VQLPIPSWithDiscriminator:
    def __init__(self, disc_start, disc_loss="hinge", codebook_weight=1.0,
                 loglaplace_weight=1.0, loggaussian_weight=1.0,
                 perceptual_weight=1.0, adversarial_weight=1.0,
                 use_adaptive_adv=True, image_size=16, key=None):
        assert disc_loss in ("hinge", "vanilla", "least_square")
        if disc_loss != "hinge":
            # TODO(synk): only the hinge GAN loss is implemented as a Pallas kernel.
            raise NotImplementedError("only hinge loss implemented")
        if key is None:
            key = jax.random.PRNGKey(0)
        keys = jax.random.split(key, 12)

        self.codebook_weight = codebook_weight
        self.loglaplace_weight = loglaplace_weight
        self.loggaussian_weight = loggaussian_weight
        self.perceptual_weight = perceptual_weight
        self.adversarial_weight = adversarial_weight
        self.use_adaptive_adv = use_adaptive_adv
        self.discriminator_iter_start = disc_start

        # --- mini LPIPS ("VGG"-style extractor + non-negative lin weights)
        self.p_w1, self.p_b1 = _conv_init(keys[0], 16, 3, 3, 3)
        self.p_w2, self.p_b2 = _conv_init(keys[1], 32, 16, 3, 3)
        self.p_w3, self.p_b3 = _conv_init(keys[2], 64, 32, 3, 3)
        self.lin_ws = [
            jnp.abs(jax.random.normal(keys[3 + i], (c,), jnp.float32)) * 0.1
            for i, c in enumerate((16, 32, 64))
        ]
        self.lpips_shift = jnp.array([-0.030, -0.088, -0.188], jnp.float32)
        self.lpips_scale = jnp.array([0.458, 0.448, 0.450], jnp.float32)

        # --- mini StyleDiscriminator (strided convs + leaky relu + linear head)
        self.d_w1, self.d_b1 = _conv_init(keys[6], 32, 3, 3, 3)
        self.d_w2, self.d_b2 = _conv_init(keys[7], 64, 32, 3, 3)
        self.d_w3, self.d_b3 = _conv_init(keys[8], 128, 64, 3, 3)
        self.d_w4, self.d_b4 = _conv_init(keys[9], 128, 128, 3, 3)
        fc_in = 128 * (image_size // 8) ** 2
        self.d_fc_w = jax.random.normal(keys[10], (fc_in, 1), jnp.float32) / jnp.sqrt(float(fc_in))
        self.d_fc_b = jnp.zeros((1,), jnp.float32)

    # --------------------------- perceptual (LPIPS-like) ---------------------
    def perceptual_loss(self, x, y):
        # Batch x and y through the feature extractor in one pass (lane/MXU fill,
        # half the pallas_call count).
        xy = jnp.concatenate([x, y], axis=0)                 # (2B, 3, H, W)
        h = jnp.transpose(xy, (0, 2, 3, 1))                  # NCHW -> NHWC
        h = (h - self.lpips_shift) / self.lpips_scale        # LPIPS scaling layer
        total = jnp.float32(0.0)
        h = conv2d(h, self.p_w1, self.p_b1, stride=1, pad=1, act="relu")
        total = total + lpips_layer_distance(h, self.lin_ws[0])
        h = conv2d(h, self.p_w2, self.p_b2, stride=2, pad=1, act="relu")
        total = total + lpips_layer_distance(h, self.lin_ws[1])
        h = conv2d(h, self.p_w3, self.p_b3, stride=2, pad=1, act="relu")
        total = total + lpips_layer_distance(h, self.lin_ws[2])
        return total

    # --------------------------- discriminator ------------------------------
    def discriminator_features(self, x_nchw):
        h = jnp.transpose(x_nchw, (0, 2, 3, 1))              # NCHW -> NHWC
        h = conv2d(h, self.d_w1, self.d_b1, stride=1, pad=1, act="lrelu")
        h = conv2d(h, self.d_w2, self.d_b2, stride=2, pad=1, act="lrelu")
        h = conv2d(h, self.d_w3, self.d_b3, stride=2, pad=1, act="lrelu")
        h = conv2d(h, self.d_w4, self.d_b4, stride=2, pad=1, act="lrelu")
        return h.reshape(h.shape[0], -1)                     # (B, 512)

    # --------------------------- forward -------------------------------------
    def forward(self, codebook_loss, inputs, reconstructions, optimizer_idx,
                global_step, first_layer=None, last_layer=None, split="train"):
        loglaplace_loss, loggaussian_loss = recon_losses(inputs, reconstructions)
        perceptual_loss = self.perceptual_loss(inputs * 2.0 - 1.0,
                                               reconstructions * 2.0 - 1.0)
        nll_loss = (self.loglaplace_weight * loglaplace_loss
                    + self.loggaussian_weight * loggaussian_loss
                    + self.perceptual_weight * perceptual_loss)

        disc_factor = jnp.where(
            jnp.asarray(global_step) >= self.discriminator_iter_start,
            jnp.float32(1.0), jnp.float32(0.0))

        if optimizer_idx == 0:
            feat_fake = self.discriminator_features(reconstructions)
            g_loss = gen_hinge_loss(feat_fake, self.d_fc_w, self.d_fc_b)
            d_weight = jnp.asarray(self.adversarial_weight, jnp.float32)
            # TODO(synk): adaptive adversarial factor (autograd w.r.t. the
            # generator's last decoder layer) has no standalone equivalent here.
            loss = (nll_loss + disc_factor * d_weight * g_loss
                    + self.codebook_weight * codebook_loss)
            log = {
                f"{split}/total_loss": loss,
                f"{split}/quant_loss": codebook_loss,
                f"{split}/rec_loss": nll_loss,
                f"{split}/loglaplace_loss": loglaplace_loss,
                f"{split}/loggaussian_loss": loggaussian_loss,
                f"{split}/perceptual_loss": perceptual_loss,
                f"{split}/d_weight": d_weight,
                f"{split}/g_loss": g_loss,
            }
            return loss, log

        if optimizer_idx == 1:
            # Real and fake batched through one discriminator pass.
            both = jnp.concatenate([jax.lax.stop_gradient(inputs),
                                    jax.lax.stop_gradient(reconstructions)], axis=0)
            feats = self.discriminator_features(both)        # (2B, 512): real|fake
            d_hinge, logits_real_mean, logits_fake_mean = disc_hinge_loss(
                feats, self.d_fc_w, self.d_fc_b)
            d_loss = disc_factor * d_hinge
            log = {
                f"{split}/disc_loss": d_loss,
                f"{split}/logits_real": logits_real_mean,
                f"{split}/logits_fake": logits_fake_mean,
            }
            return d_loss, log

        raise ValueError(f"bad optimizer_idx {optimizer_idx}")


# ---------------------------------------------------------------------------
# Demo
# ---------------------------------------------------------------------------

if __name__ == "__main__":
    key = jax.random.PRNGKey(0)
    k_in, k_rec, k_params = jax.random.split(key, 3)

    B, C, H, W = 2, 3, 16, 16
    inputs = jax.random.uniform(k_in, (B, C, H, W), jnp.float32)
    reconstructions = jax.random.uniform(k_rec, (B, C, H, W), jnp.float32)
    codebook_loss = jnp.float32(0.05)

    model = VQLPIPSWithDiscriminator(disc_start=0, image_size=H, key=k_params)

    loss_g, log_g = model.forward(codebook_loss, inputs, reconstructions,
                                  optimizer_idx=0, global_step=10)
    loss_d, log_d = model.forward(codebook_loss, inputs, reconstructions,
                                  optimizer_idx=1, global_step=10)

    jax.block_until_ready((loss_g, loss_d, log_g, log_d))
    assert jnp.isfinite(loss_g) and jnp.isfinite(loss_d)
    print("KERNEL_OK")
</pallas_src>

<mosaic_0001>
module attributes {stable_mosaic.version = 11 : i64} {
  func.func @_recon_sum_kernel(%arg0: i32, %arg1: memref<16x128xf32, #tpu.memory_space<vmem>>, %arg2: memref<16x128xf32, #tpu.memory_space<vmem>>, %arg3: memref<1x1xf32, #tpu.memory_space<vmem>>, %arg4: memref<1x1xf32, #tpu.memory_space<vmem>>) attributes {dimension_semantics = [#tpu.dimension_semantics<arbitrary>], iteration_bounds = array<i64: 1>, scalar_prefetch = 0 : i64, scratch_operands = 0 : i64, tpu.core_type = #tpu.core_type<tc>, window_params = [{transform_indices = @transform_0, window_bounds = array<i64: 16, 128>}, {transform_indices = @transform_1, window_bounds = array<i64: 16, 128>}, {pipeline_mode = #tpu.pipeline_mode<synchronous>, transform_indices = @transform_2, window_bounds = array<i64: 1, 1>}, {pipeline_mode = #tpu.pipeline_mode<synchronous>, transform_indices = @transform_3, window_bounds = array<i64: 1, 1>}]} {
    %c0_i32 = arith.constant 0 : i32
    %0 = arith.cmpi eq, %arg0, %c0_i32 : i32
    %1 = arith.extui %0 : i1 to i32
    %c0_i32_0 = arith.constant 0 : i32
    %2 = arith.cmpi ne, %1, %c0_i32_0 : i32
    scf.if %2 {
      %cst_13 = arith.constant 0.000000e+00 : f32
      %24 = vector.broadcast %cst_13 : f32 to vector<1x1xf32>
      %c0_14 = arith.constant 0 : index
      %c0_15 = arith.constant 0 : index
      %25 = vector.load %arg3[%c0_14, %c0_15] : memref<1x1xf32, #tpu.memory_space<vmem>>, vector<1x1xf32>
      tpu.vector_store %arg3[%c0_14, %c0_15], %24 {strides = array<i32>} : memref<1x1xf32, #tpu.memory_space<vmem>>, vector<1x1xf32>,
      %cst_16 = arith.constant 0.000000e+00 : f32
      %26 = vector.broadcast %cst_16 : f32 to vector<1x1xf32>
      %c0_17 = arith.constant 0 : index
      %c0_18 = arith.constant 0 : index
      %27 = vector.load %arg4[%c0_17, %c0_18] : memref<1x1xf32, #tpu.memory_space<vmem>>, vector<1x1xf32>
      tpu.vector_store %arg4[%c0_17, %c0_18], %26 {strides = array<i32>} : memref<1x1xf32, #tpu.memory_space<vmem>>, vector<1x1xf32>,
    } else {
    }
    %c0 = arith.constant 0 : index
    %c0_1 = arith.constant 0 : index
    %3 = vector.load %arg2[%c0, %c0_1] : memref<16x128xf32, #tpu.memory_space<vmem>>, vector<16x128xf32>
    %c0_2 = arith.constant 0 : index
    %c0_3 = arith.constant 0 : index
    %4 = vector.load %arg1[%c0_2, %c0_3] : memref<16x128xf32, #tpu.memory_space<vmem>>, vector<16x128xf32>
    %5 = arith.subf %3, %4 : vector<16x128xf32>
    %c0_4 = arith.constant 0 : index
    %c0_5 = arith.constant 0 : index
    %6 = vector.load %arg3[%c0_4, %c0_5] : memref<1x1xf32, #tpu.memory_space<vmem>>, vector<1x1xf32>
    %7 = math.absf %5 : vector<16x128xf32>
    %8 = vector.shape_cast %7 : vector<16x128xf32> to vector<1x16x128xf32>
    %cst = arith.constant dense<0.000000e+00> : vector<1xf32>
    %9 = vector.multi_reduction <add>, %8, %cst [1, 2] : vector<1x16x128xf32> to vector<1xf32>
    %10 = vector.shape_cast %9 : vector<1xf32> to vector<1x1x1xf32>
    %11 = vector.extract %10[0, 0, 0] : f32 from vector<1x1x1xf32>
    %12 = vector.broadcast %11 : f32 to vector<1x1xf32>
    %13 = arith.addf %6, %12 : vector<1x1xf32>
    %c0_6 = arith.constant 0 : index
    %c0_7 = arith.constant 0 : index
    %14 = vector.load %arg3[%c0_6, %c0_7] : memref<1x1xf32, #tpu.memory_space<vmem>>, vector<1x1xf32>
    tpu.vector_store %arg3[%c0_6, %c0_7], %13 {strides = array<i32>} : memref<1x1xf32, #tpu.memory_space<vmem>>, vector<1x1xf32>,
    %c0_8 = arith.constant 0 : index
    %c0_9 = arith.constant 0 : index
    %15 = vector.load %arg4[%c0_8, %c0_9] : memref<1x1xf32, #tpu.memory_space<vmem>>, vector<1x1xf32>
    %16 = arith.mulf %5, %5 : vector<16x128xf32>
    %17 = vector.shape_cast %16 : vector<16x128xf32> to vector<1x16x128xf32>
    %cst_10 = arith.constant dense<0.000000e+00> : vector<1xf32>
    %18 = vector.multi_reduction <add>, %17, %cst_10 [1, 2] : vector<1x16x128xf32> to vector<1xf32>
    %19 = vector.shape_cast %18 : vector<1xf32> to vector<1x1x1xf32>
    %20 = vector.extract %19[0, 0, 0] : f32 from vector<1x1x1xf32>
    %21 = vector.broadcast %20 : f32 to vector<1x1xf32>
    %22 = arith.addf %15, %21 : vector<1x1xf32>
    %c0_11 = arith.constant 0 : index
    %c0_12 = arith.constant 0 : index
    %23 = vector.load %arg4[%c0_11, %c0_12] : memref<1x1xf32, #tpu.memory_space<vmem>>, vector<1x1xf32>
    tpu.vector_store %arg4[%c0_11, %c0_12], %22 {strides = array<i32>} : memref<1x1xf32, #tpu.memory_space<vmem>>, vector<1x1xf32>,
    return
  }
  func.func @transform_0(%arg0: i32) -> (i32, i32) {
    %c0_i32 = arith.constant 0 : i32
    %c0_i32_0 = arith.constant 0 : i32
    return %arg0, %c0_i32 : i32, i32
  }
  func.func @transform_1(%arg0: i32) -> (i32, i32) {
    %c0_i32 = arith.constant 0 : i32
    %c0_i32_0 = arith.constant 0 : i32
    return %arg0, %c0_i32 : i32, i32
  }
  func.func @transform_2(%arg0: i32) -> (i32, i32) {
    %c0_i32 = arith.constant 0 : i32
    %c0_i32_0 = arith.constant 0 : i32
    %c0_i32_1 = arith.constant 0 : i32
    return %c0_i32, %c0_i32_0 : i32, i32
  }
  func.func @transform_3(%arg0: i32) -> (i32, i32) {
    %c0_i32 = arith.constant 0 : i32
    %c0_i32_0 = arith.constant 0 : i32
    %c0_i32_1 = arith.constant 0 : i32
    return %c0_i32, %c0_i32_0 : i32, i32
  }
}

</mosaic_0001>

<llo_original>
// kernel: tpu_custom_call.1
$region0: #{tpu_custom_call.1}
  #allocation0 [shape = 'u32[]', space=smem, size = 0x4, offset = 0x4, fixed_abs, tag = 'smem constant byte address 0x4 - core index']
  #allocation1 [shape = 'u32[144,128]{1,0:T(1,128)}', space=vmem, size = 0x12000, scoped, tag = 'internal scratch']
  %s0 = inlined_call_operand.hbm [shape: f32[16,128], index: 0, kind: input, shape index: {}]
  %s1 = inlined_call_operand.hbm [shape: f32[16,128], index: 1, kind: input, shape index: {}]
  %s2 = inlined_call_operand.hbm [shape: f32[1,1], index: 2, kind: output, shape index: {0}]
  %s3 = inlined_call_operand.hbm [shape: f32[1,1], index: 3, kind: output, shape index: {1}]
  %4 = xla_tuple %s2, %s3
  %s5 = sld [smem:[#allocation0]]
  $region38: #{tpu_custom_call.1} parent=0
    _
  %s7 = ssub.s32 1, %s5
  %s8 = scalar_select 0, %s7, %s5
  $region1: #{tpu_custom_call.1} parent=0
    #allocation2 [shape = 'u8[8192]{0}', space=vmem, size = 0x2000, scoped, tag = 'input window, operand 0, single buffered']
    #allocation3 [shape = 's32[1]{0}', space=sflag, size = 0x4, scoped, tag = 'scoped memory for tpu_custom_call.1']
    #allocation4 [shape = 's32[1]{0}', space=sflag, size = 0x4, scoped, tag = 'scoped memory for tpu_custom_call.1']
    #allocation5 [shape = 'u8[8192]{0}', space=vmem, size = 0x2000, scoped, tag = 'input window, operand 1, single buffered']
    #allocation6 [shape = 's32[1]{0}', space=sflag, size = 0x4, scoped, tag = 'scoped memory for tpu_custom_call.1']
    #allocation7 [shape = 'u8[512]{0}', space=vmem, size = 0x400, scoped, tag = 'output window, operand 0, single buffered']
    #allocation8 [shape = 'u8[512]{0}', space=vmem, size = 0x400, scoped, tag = 'output window, operand 1, single buffered']
    #allocation9 [shape = 's32[1]{0}', space=sflag, size = 0x4, scoped, tag = 'scoped memory for tpu_custom_call.1']
    %9 = vsyncpa [#allocation3], 0
    %10 = vsyncpa [#allocation6], 0
    %11 = vsyncpa [#allocation4], 0
    %12 = vsyncpa [#allocation9], 0
    // Predicated region
    $region2: #{tpu_custom_call.1} parent=1 // pred_check
      _
    $region3: #{tpu_custom_call.1} parent=1 // pred_check_branch
      %14 = sbr.rel (0) target = $region5
    $region4: #{tpu_custom_call.1} parent=1 // pred_region
      %s16 = ssub.s32 256, 256
      %17 = vsyncadd [#allocation3], %s16
      %s18 = sshll.u32 [#allocation2], 4
      %s19 = int_to_ptr.vmem [resolvable:$true] %s18
      %24 = dma.hbm_to_vmem [thread:$0]  %s0, 256, %s19, [#allocation3], 128, 128, 8
    $region5: #{tpu_custom_call.1} parent=1 // pred_fallthru
      _
    // Predicated region
    $region6: #{tpu_custom_call.1} parent=1 // pred_check
      _
    $region7: #{tpu_custom_call.1} parent=1 // pred_check_branch
      %26 = sbr.rel (0) target = $region9
    $region8: #{tpu_custom_call.1} parent=1 // pred_region
      %s28 = ssub.s32 256, 256
      %29 = vsyncadd [#allocation6], %s28
      %s30 = sshll.u32 [#allocation5], 4
      %s31 = int_to_ptr.vmem [resolvable:$true] %s30
      %36 = dma.hbm_to_vmem [thread:$0]  %s1, 256, %s31, [#allocation6], 128, 128, 8
    $region9: #{tpu_custom_call.1} parent=1 // pred_fallthru
      _
    // Predicated region
    $region10: #{tpu_custom_call.1} parent=1 // pred_check
      _
    $region11: #{tpu_custom_call.1} parent=1 // pred_check_branch
      %38 = sbr.rel (0) target = $region13
    $region12: #{tpu_custom_call.1} parent=1 // pred_region
      %39 = dma.done [#allocation3], 256
    $region13: #{tpu_custom_call.1} parent=1 // pred_fallthru
      _
    // Predicated region
    $region14: #{tpu_custom_call.1} parent=1 // pred_check
      _
    $region15: #{tpu_custom_call.1} parent=1 // pred_check_branch
      %41 = sbr.rel (0) target = $region17
    $region16: #{tpu_custom_call.1} parent=1 // pred_region
      %42 = dma.done [#allocation6], 256
    $region17: #{tpu_custom_call.1} parent=1 // pred_fallthru
      _
    %p43 = scmp.eq.s32.totalorder 0, 0
    // Predicated region
    $region18: #{tpu_custom_call.1} parent=1 // pred_check
      %p44 = pneg %p43
    $region19: #{tpu_custom_call.1} parent=1 // pred_check_branch
      %46 = sbr.rel (%p44) target = $region21
    $region20: #{tpu_custom_call.1} parent=1 // pred_region
      %vm47 = vcmask 0
      %48 = vst.msk [vmem:[#allocation7] sm:$0x1] %vm47, 0.0
      %49 = vst.msk [vmem:[#allocation8] sm:$0x1] %vm47, 0.0
    $region21: #{tpu_custom_call.1} parent=1 // pred_fallthru
      _
    %v50 = vld [vmem:[#allocation5] sm:$0xff]
    %v51 = vld [vmem:[#allocation5 + $0x8] sm:$0xff]
    %v52 = vld [vmem:[#allocation2] sm:$0xff]
    %v53 = vld [vmem:[#allocation2 + $0x8] sm:$0xff]
    %v54 = vsub.f32 %v50, %v52
    %v55 = vsub.f32 %v51, %v53
    %v56 = vld [vmem:[#allocation7] sm:$0x1]
    %v57 = vand.u32 2147483647, %v54
    %v58 = vand.u32 2147483647, %v55
    %v59 = vadd.f32 %v57, %v58
    %60 = vadd.xlane.f32.xlu0 %v59
    %v61 = vpop.xlane.xlu0 %60
    %v62 = vrot.slane %v61, 4
    %v63 = vadd.f32 %v61, %v62
    %v64 = vrot.slane %v63, 2
    %v65 = vadd.f32 %v63, %v64
    %v66 = vrot.slane %v65, 1
    %v67 = vadd.f32 %v65, %v66
    %s68 = vtos %v67
    %v69 = vstv %s68
    %v70 = vadd.f32 %v56, %v69
    %vm71 = vcmask 0
    %72 = vst.msk [vmem:[#allocation7] sm:$0x1] %vm71, %v70
    %v73 = vld [vmem:[#allocation8] sm:$0x1]
    %v74 = vmul.f32 %v54, %v54
    %v75 = vmul.f32 %v55, %v55
    %v76 = vadd.f32 %v74, %v75
    %77 = vadd.xlane.f32.xlu0 %v76
    %v78 = vpop.xlane.xlu0 %77
    %v79 = vrot.slane %v78, 4
    %v80 = vadd.f32 %v78, %v79
    %v81 = vrot.slane %v80, 2
    %v82 = vadd.f32 %v80, %v81
    %v83 = vrot.slane %v82, 1
    %v84 = vadd.f32 %v82, %v83
    %s85 = vtos %v84
    %v86 = vstv %s85
    %v87 = vadd.f32 %v73, %v86
    %88 = vst.msk [vmem:[#allocation8] sm:$0x1] %vm71, %v87
    // Predicated region
    $region22: #{tpu_custom_call.1} parent=1 // pred_check
      _
    $region23: #{tpu_custom_call.1} parent=1 // pred_check_branch
      %90 = sbr.rel (0) target = $region25
    $region24: #{tpu_custom_call.1} parent=1 // pred_region
      %s92 = ssub.s32 16, 16
      %93 = vsyncadd [#allocation4], %s92
      %s95 = sshll.u32 [#allocation7], 4
      %s96 = int_to_ptr.vmem [resolvable:$true] %s95
      %98 = dma.vmem_to_hbm [thread:$0]  %s96, 16, %s2, [#allocation4]
    $region25: #{tpu_custom_call.1} parent=1 // pred_fallthru
      _
    // Predicated region
    $region26: #{tpu_custom_call.1} parent=1 // pred_check
      _
    $region27: #{tpu_custom_call.1} parent=1 // pred_check_branch
      %100 = sbr.rel (0) target = $region29
    $region28: #{tpu_custom_call.1} parent=1 // pred_region
      %s102 = ssub.s32 16, 16
      %103 = vsyncadd [#allocation9], %s102
      %s105 = sshll.u32 [#allocation8], 4
      %s106 = int_to_ptr.vmem [resolvable:$true] %s105
      %108 = dma.vmem_to_hbm [thread:$0]  %s106, 16, %s3, [#allocation9]
    $region29: #{tpu_custom_call.1} parent=1 // pred_fallthru
      _
    // Predicated region
    $region30: #{tpu_custom_call.1} parent=1 // pred_check
      _
    $region31: #{tpu_custom_call.1} parent=1 // pred_check_branch
      %110 = sbr.rel (0) target = $region33
    $region32: #{tpu_custom_call.1} parent=1 // pred_region
      %111 = dma.done [#allocation4], 16
    $region33: #{tpu_custom_call.1} parent=1 // pred_fallthru
      _
    // Predicated region
    $region34: #{tpu_custom_call.1} parent=1 // pred_check
      _
    $region35: #{tpu_custom_call.1} parent=1 // pred_check_branch
      %113 = sbr.rel (0) target = $region37
    $region36: #{tpu_custom_call.1} parent=1 // pred_region
      %114 = dma.done [#allocation9], 16
    $region37: #{tpu_custom_call.1} parent=1 // pred_fallthru
      _
    %115 = vsyncpa [#allocation3], 1
    %116 = vsyncpa [#allocation6], 1
    %117 = vsyncpa [#allocation4], 1
    %118 = vsyncpa [#allocation9], 1

</llo_original>
